<compile_context>
chip_gen: v6e
topology: v6e:2x2x1
jax: 0.10.0
libtpu: 0.0.40
codegen_flags: <defaults>
</compile_context>

<pallas_src>
import functools

import jax
import jax.numpy as jnp
from jax import lax
from jax.experimental import pallas as pl
from jax.experimental.pallas import tpu as pltpu


def _mha_fused_kernel(x_ref, wqkv_ref, wout_ref, b_ref, o_ref, *, num_heads, head_dim):
    # x_ref:    (1, T, d_in)        bf16   batch-b block
    # wqkv_ref: (d_in, 3*H*dh)      bf16   resident (Q | K | V, heads stacked on lanes)
    # wout_ref: (H, dh, H*dh)       bf16   resident (out_proj rows grouped per head)
    # b_ref:    (1, H*dh)           f32    resident
    # o_ref:    (1, T, H*dh)        f32
    T = x_ref.shape[1]
    D = num_heads * head_dim

    x = x_ref[0]                                                        # (T, d_in) bf16
    # Fused QKV projection for all heads in one MXU matmul, f32 accumulation.
    qkv = jnp.dot(x, wqkv_ref[...], preferred_element_type=jnp.float32)  # (T, 3D) f32

    scale = 1.0 / (float(head_dim) ** 0.5)
    q = (qkv[:, 0:D] * scale).astype(jnp.bfloat16)      # scale folded into Q
    k = qkv[:, D:2 * D].astype(jnp.bfloat16)
    v = qkv[:, 2 * D:3 * D].astype(jnp.bfloat16)

    row = lax.broadcasted_iota(jnp.int32, (T, T), 0)
    col = lax.broadcasted_iota(jnp.int32, (T, T), 1)
    keep = col <= row                                   # causal: mask strict upper tri

    acc = jnp.zeros((T, D), jnp.float32)
    for h in range(num_heads):                          # static unroll over heads
        lo = h * head_dim
        hi = lo + head_dim
        # scores_h = Q_h K_h^T without materializing K^T.
        s = lax.dot_general(q[:, lo:hi], k[:, lo:hi],
                            (((1,), (1,)), ((), ())),
                            preferred_element_type=jnp.float32)          # (T, T)
        s = jnp.where(keep, s, -jnp.inf)                # diagonal always unmasked
        m = jnp.max(s, axis=-1, keepdims=True)
        e = jnp.exp(s - m)
        denom = jnp.sum(e, axis=-1, keepdims=True)
        p = (e * pl.reciprocal(denom, approx=True)).astype(jnp.bfloat16)  # (T, T)
        ctx_h = jnp.dot(p, v[:, lo:hi],
                        preferred_element_type=jnp.float32)              # (T, dh) f32
        # Fused head-concat + output projection: add this head's row-block of W_out.
        acc = acc + jnp.dot(ctx_h.astype(jnp.bfloat16), wout_ref[h],
                            preferred_element_type=jnp.float32)          # (T, D)

    o_ref[0] = (acc + b_ref[...]).astype(o_ref.dtype)


def multi_head_attention_wrapper(x, wq, wk, wv, w_out, b_out):
    """
    x:        (B, T, d_in)                 f32
    wq/wk/wv: (H, d_in, d_out)             f32 (already x @ W layout)
    w_out:    (H*d_out, H*d_out)           f32 (math layout: y = ctx @ w_out + b_out)
    b_out:    (H*d_out,)                   f32
    returns   (B, T, H*d_out)              f32
    """
    B, T, d_in = x.shape
    H, _, d_out = wq.shape
    D = H * d_out

    # Stack per-head weights so columns are [head0 | head1 | ...], then concat Q|K|V.
    def _fuse(w):                                  # (H, d_in, d_out) -> (d_in, H*d_out)
        return jnp.transpose(w, (1, 0, 2)).reshape(d_in, D)

    wqkv = jnp.concatenate([_fuse(wq), _fuse(wk), _fuse(wv)], axis=-1)   # (d_in, 3D)

    # bf16 MXU operands (v5e/v6e/v7x), f32 accumulation inside the kernel.
    x_bf = x.astype(jnp.bfloat16)
    wqkv_bf = wqkv.astype(jnp.bfloat16)
    wout_bf = w_out.reshape(H, d_out, D).astype(jnp.bfloat16)   # per-head row blocks
    b2d = b_out.reshape(1, D).astype(jnp.float32)

    kernel = functools.partial(_mha_fused_kernel, num_heads=H, head_dim=d_out)

    return pl.pallas_call(
        kernel,
        out_shape=jax.ShapeDtypeStruct((B, T, D), jnp.float32),
        grid=(B,),
        in_specs=[
            pl.BlockSpec((1, T, d_in), lambda b: (b, 0, 0)),       # per-batch activations
            pl.BlockSpec((d_in, 3 * D), lambda b: (0, 0)),         # weights: VMEM-resident
            pl.BlockSpec((H, d_out, D), lambda b: (0, 0, 0)),      # weights: VMEM-resident
            pl.BlockSpec((1, D), lambda b: (0, 0)),                # bias:    VMEM-resident
        ],
        out_specs=pl.BlockSpec((1, T, D), lambda b: (b, 0, 0)),    # [B, T, H*d_out] direct
        compiler_params=pltpu.CompilerParams(
            dimension_semantics=("parallel",)),                    # megacore over batch
    )(x_bf, wqkv_bf, wout_bf, b2d)


def _reference(x, wq, wk, wv, w_out, b_out):
    """Pure-JAX f32 reference mirroring the PyTorch forward (eval mode)."""
    B, T, d_in = x.shape
    H, _, d_out = wq.shape
    mask = jnp.triu(jnp.ones((T, T), dtype=bool), k=1)
    heads = []
    for h in range(H):
        q = x @ wq[h]
        k = x @ wk[h]
        v = x @ wv[h]
        s = jnp.einsum("btd,bsd->bts", q, k)
        s = jnp.where(mask[None], -jnp.inf, s)
        w = jax.nn.softmax(s / jnp.sqrt(jnp.float32(d_out)), axis=-1)
        heads.append(w @ v)
    ctx = jnp.concatenate(heads, axis=-1)
    return ctx @ w_out + b_out


if __name__ == "__main__":
    # Small shapes consistent with the module.
    B, T = 2, 8            # batch, num_tokens (== context_length)
    d_in, d_out = 32, 16
    H = 2                  # num_heads
    D = H * d_out

    key = jax.random.PRNGKey(0)
    kx, kq, kk, kv, kw, kb = jax.random.split(key, 6)

    x = jax.random.normal(kx, (B, T, d_in), dtype=jnp.float32)
    wq = jax.random.normal(kq, (H, d_in, d_out), dtype=jnp.float32) * 0.1
    wk = jax.random.normal(kk, (H, d_in, d_out), dtype=jnp.float32) * 0.1
    wv = jax.random.normal(kv, (H, d_in, d_out), dtype=jnp.float32) * 0.1
    w_out = jax.random.normal(kw, (D, D), dtype=jnp.float32) * 0.1
    b_out = jax.random.normal(kb, (D,), dtype=jnp.float32) * 0.1

    fwd = jax.jit(multi_head_attention_wrapper)
    out = jax.block_until_ready(fwd(x, wq, wk, wv, w_out, b_out))

    ref = _reference(x, wq, wk, wv, w_out, b_out)
    assert out.shape == (B, T, D)
    # bf16 MXU operands -> relaxed tolerance vs the pure-f32 reference.
    max_err = float(jnp.max(jnp.abs(out - ref)))
    assert jnp.allclose(out, ref, atol=5e-2, rtol=5e-2), f"mismatch vs reference (max abs err {max_err})"

    print("KERNEL_OK")
</pallas_src>

<mosaic_0001>
module attributes {stable_mosaic.version = 11 : i64} {
  func.func @_mha_fused_kernel(%arg0: i32, %arg1: memref<1x8x32xbf16, #tpu.memory_space<vmem>>, %arg2: memref<32x96xbf16, #tpu.memory_space<vmem>>, %arg3: memref<2x16x32xbf16, #tpu.memory_space<vmem>>, %arg4: memref<1x32xf32, #tpu.memory_space<vmem>>, %arg5: memref<1x8x32xf32, #tpu.memory_space<vmem>>) attributes {dimension_semantics = [#tpu.dimension_semantics<parallel>], iteration_bounds = array<i64: 2>, scalar_prefetch = 0 : i64, scratch_operands = 0 : i64, tpu.core_type = #tpu.core_type<tc>, window_params = [{transform_indices = @transform_0, window_bounds = array<i64: 1, 8, 32>}, {pipeline_mode = #tpu.pipeline_mode<synchronous>, transform_indices = @transform_1, window_bounds = array<i64: 32, 96>}, {pipeline_mode = #tpu.pipeline_mode<synchronous>, transform_indices = @transform_2, window_bounds = array<i64: 2, 16, 32>}, {pipeline_mode = #tpu.pipeline_mode<synchronous>, transform_indices = @transform_3, window_bounds = array<i64: 1, 32>}, {transform_indices = @transform_4, window_bounds = array<i64: 1, 8, 32>}]} {
    %c0 = arith.constant 0 : index
    %c0_0 = arith.constant 0 : index
    %c0_1 = arith.constant 0 : index
    %0 = vector.load %arg1[%c0, %c0_0, %c0_1] : memref<1x8x32xbf16, #tpu.memory_space<vmem>>, vector<1x8x32xbf16>
    %1 = vector.shape_cast %0 : vector<1x8x32xbf16> to vector<8x32xbf16>
    %c0_2 = arith.constant 0 : index
    %c0_3 = arith.constant 0 : index
    %2 = vector.load %arg2[%c0_2, %c0_3] : memref<32x96xbf16, #tpu.memory_space<vmem>>, vector<32x96xbf16>
    %cst = arith.constant dense<0.000000e+00> : vector<8x96xf32>
    %3 = tpu.matmul %1, %2, %cst {dimension_numbers = #tpu.dot_dimension_numbers<[1], [0], [0], [1], [0, 0, 1, 1], [], []>} : vector<8x32xbf16>, vector<32x96xbf16>, vector<8x96xf32> -> vector<8x96xf32>
    %4 = vector.extract_strided_slice %3 {offsets = [0, 0], sizes = [8, 32], strides = [1, 1]} : vector<8x96xf32> to vector<8x32xf32>
    %cst_4 = arith.constant 2.500000e-01 : f32
    %5 = vector.broadcast %cst_4 : f32 to vector<8x32xf32>
    %6 = arith.mulf %4, %5 : vector<8x32xf32>
    %7 = arith.truncf %6 : vector<8x32xf32> to vector<8x32xbf16>
    %8 = vector.extract_strided_slice %3 {offsets = [0, 32], sizes = [8, 32], strides = [1, 1]} : vector<8x96xf32> to vector<8x32xf32>
    %9 = arith.truncf %8 : vector<8x32xf32> to vector<8x32xbf16>
    %10 = vector.extract_strided_slice %3 {offsets = [0, 64], sizes = [8, 32], strides = [1, 1]} : vector<8x96xf32> to vector<8x32xf32>
    %11 = arith.truncf %10 : vector<8x32xf32> to vector<8x32xbf16>
    %12 = tpu.iota {dimensions = array<i32: 0>} : vector<8x8xi32>
    %13 = tpu.iota {dimensions = array<i32: 1>} : vector<8x8xi32>
    %14 = arith.cmpi sle, %13, %12 : vector<8x8xi32>
    %cst_5 = arith.constant 0.000000e+00 : f32
    %15 = vector.broadcast %cst_5 : f32 to vector<8x32xf32>
    %16 = vector.extract_strided_slice %7 {offsets = [0, 0], sizes = [8, 16], strides = [1, 1]} : vector<8x32xbf16> to vector<8x16xbf16>
    %17 = vector.extract_strided_slice %9 {offsets = [0, 0], sizes = [8, 16], strides = [1, 1]} : vector<8x32xbf16> to vector<8x16xbf16>
    %cst_6 = arith.constant dense<0.000000e+00> : vector<8x8xf32>
    %18 = tpu.matmul %16, %17, %cst_6 {dimension_numbers = #tpu.dot_dimension_numbers<[1], [1], [0], [0], [0, 0, 1, 0], [], []>} : vector<8x16xbf16>, vector<8x16xbf16>, vector<8x8xf32> -> vector<8x8xf32>
    %cst_7 = arith.constant 0xFF800000 : f32
    %19 = vector.broadcast %cst_7 : f32 to vector<8x8xf32>
    %20 = arith.select %14, %18, %19 : vector<8x8xi1>, vector<8x8xf32>
    %cst_8 = arith.constant dense<0xFF800000> : vector<8xf32>
    %21 = vector.multi_reduction <maximumf>, %20, %cst_8 [1] : vector<8x8xf32> to vector<8xf32>
    %22 = vector.shape_cast %21 : vector<8xf32> to vector<8x1xf32>
    %23 = vector.broadcast %22 : vector<8x1xf32> to vector<8x8xf32>
    %24 = arith.subf %20, %23 : vector<8x8xf32>
    %25 = math.exp %24 : vector<8x8xf32>
    %cst_9 = arith.constant dense<0.000000e+00> : vector<8xf32>
    %26 = vector.multi_reduction <add>, %25, %cst_9 [1] : vector<8x8xf32> to vector<8xf32>
    %27 = vector.shape_cast %26 : vector<8xf32> to vector<8x1xf32>
    %28 = tpu.reciprocal %27 {approx = true} : vector<8x1xf32> -> vector<8x1xf32>
    %29 = vector.broadcast %28 : vector<8x1xf32> to vector<8x8xf32>
    %30 = arith.mulf %25, %29 : vector<8x8xf32>
    %31 = arith.truncf %30 : vector<8x8xf32> to vector<8x8xbf16>
    %32 = vector.extract_strided_slice %11 {offsets = [0, 0], sizes = [8, 16], strides = [1, 1]} : vector<8x32xbf16> to vector<8x16xbf16>
    %cst_10 = arith.constant dense<0.000000e+00> : vector<8x16xf32>
    %33 = tpu.matmul %31, %32, %cst_10 {dimension_numbers = #tpu.dot_dimension_numbers<[1], [0], [0], [1], [0, 0, 1, 1], [], []>} : vector<8x8xbf16>, vector<8x16xbf16>, vector<8x16xf32> -> vector<8x16xf32>
    %34 = arith.truncf %33 : vector<8x16xf32> to vector<8x16xbf16>
    %c0_11 = arith.constant 0 : index
    %c0_12 = arith.constant 0 : index
    %c0_13 = arith.constant 0 : index
    %35 = vector.load %arg3[%c0_11, %c0_12, %c0_13] : memref<2x16x32xbf16, #tpu.memory_space<vmem>>, vector<1x16x32xbf16>
    %36 = vector.shape_cast %35 : vector<1x16x32xbf16> to vector<16x32xbf16>
    %cst_14 = arith.constant dense<0.000000e+00> : vector<8x32xf32>
    %37 = tpu.matmul %34, %36, %cst_14 {dimension_numbers = #tpu.dot_dimension_numbers<[1], [0], [0], [1], [0, 0, 1, 1], [], []>} : vector<8x16xbf16>, vector<16x32xbf16>, vector<8x32xf32> -> vector<8x32xf32>
    %38 = arith.addf %15, %37 : vector<8x32xf32>
    %39 = vector.extract_strided_slice %7 {offsets = [0, 16], sizes = [8, 16], strides = [1, 1]} : vector<8x32xbf16> to vector<8x16xbf16>
    %40 = vector.extract_strided_slice %9 {offsets = [0, 16], sizes = [8, 16], strides = [1, 1]} : vector<8x32xbf16> to vector<8x16xbf16>
    %cst_15 = arith.constant dense<0.000000e+00> : vector<8x8xf32>
    %41 = tpu.matmul %39, %40, %cst_15 {dimension_numbers = #tpu.dot_dimension_numbers<[1], [1], [0], [0], [0, 0, 1, 0], [], []>} : vector<8x16xbf16>, vector<8x16xbf16>, vector<8x8xf32> -> vector<8x8xf32>
    %cst_16 = arith.constant 0xFF800000 : f32
    %42 = vector.broadcast %cst_16 : f32 to vector<8x8xf32>
    %43 = arith.select %14, %41, %42 : vector<8x8xi1>, vector<8x8xf32>
    %cst_17 = arith.constant dense<0xFF800000> : vector<8xf32>
    %44 = vector.multi_reduction <maximumf>, %43, %cst_17 [1] : vector<8x8xf32> to vector<8xf32>
    %45 = vector.shape_cast %44 : vector<8xf32> to vector<8x1xf32>
    %46 = vector.broadcast %45 : vector<8x1xf32> to vector<8x8xf32>
    %47 = arith.subf %43, %46 : vector<8x8xf32>
    %48 = math.exp %47 : vector<8x8xf32>
    %cst_18 = arith.constant dense<0.000000e+00> : vector<8xf32>
    %49 = vector.multi_reduction <add>, %48, %cst_18 [1] : vector<8x8xf32> to vector<8xf32>
    %50 = vector.shape_cast %49 : vector<8xf32> to vector<8x1xf32>
    %51 = tpu.reciprocal %50 {approx = true} : vector<8x1xf32> -> vector<8x1xf32>
    %52 = vector.broadcast %51 : vector<8x1xf32> to vector<8x8xf32>
    %53 = arith.mulf %48, %52 : vector<8x8xf32>
    %54 = arith.truncf %53 : vector<8x8xf32> to vector<8x8xbf16>
    %55 = vector.extract_strided_slice %11 {offsets = [0, 16], sizes = [8, 16], strides = [1, 1]} : vector<8x32xbf16> to vector<8x16xbf16>
    %cst_19 = arith.constant dense<0.000000e+00> : vector<8x16xf32>
    %56 = tpu.matmul %54, %55, %cst_19 {dimension_numbers = #tpu.dot_dimension_numbers<[1], [0], [0], [1], [0, 0, 1, 1], [], []>} : vector<8x8xbf16>, vector<8x16xbf16>, vector<8x16xf32> -> vector<8x16xf32>
    %57 = arith.truncf %56 : vector<8x16xf32> to vector<8x16xbf16>
    %c1 = arith.constant 1 : index
    %c0_20 = arith.constant 0 : index
    %c0_21 = arith.constant 0 : index
    %58 = vector.load %arg3[%c1, %c0_20, %c0_21] : memref<2x16x32xbf16, #tpu.memory_space<vmem>>, vector<1x16x32xbf16>
    %59 = vector.shape_cast %58 : vector<1x16x32xbf16> to vector<16x32xbf16>
    %cst_22 = arith.constant dense<0.000000e+00> : vector<8x32xf32>
    %60 = tpu.matmul %57, %59, %cst_22 {dimension_numbers = #tpu.dot_dimension_numbers<[1], [0], [0], [1], [0, 0, 1, 1], [], []>} : vector<8x16xbf16>, vector<16x32xbf16>, vector<8x32xf32> -> vector<8x32xf32>
    %61 = arith.addf %38, %60 : vector<8x32xf32>
    %c0_23 = arith.constant 0 : index
    %c0_24 = arith.constant 0 : index
    %62 = vector.load %arg4[%c0_23, %c0_24] : memref<1x32xf32, #tpu.memory_space<vmem>>, vector<1x32xf32>
    %63 = vector.broadcast %62 : vector<1x32xf32> to vector<8x32xf32>
    %64 = arith.addf %61, %63 : vector<8x32xf32>
    %c0_25 = arith.constant 0 : index
    %c0_26 = arith.constant 0 : index
    %c0_27 = arith.constant 0 : index
    %65 = vector.load %arg5[%c0_25, %c0_26, %c0_27] : memref<1x8x32xf32, #tpu.memory_space<vmem>>, vector<1x8x32xf32>
    %66 = vector.shape_cast %65 : vector<1x8x32xf32> to vector<8x32xf32>
    %67 = vector.shape_cast %64 : vector<8x32xf32> to vector<1x8x32xf32>
    tpu.vector_store %arg5[%c0_25, %c0_26, %c0_27], %67 {strides = array<i32>} : memref<1x8x32xf32, #tpu.memory_space<vmem>>, vector<1x8x32xf32>,
    return
  }
  func.func @transform_0(%arg0: i32) -> (i32, i32, i32) {
    %c0_i32 = arith.constant 0 : i32
    %c0_i32_0 = arith.constant 0 : i32
    %c0_i32_1 = arith.constant 0 : i32
    return %arg0, %c0_i32, %c0_i32_0 : i32, i32, i32
  }
  func.func @transform_1(%arg0: i32) -> (i32, i32) {
    %c0_i32 = arith.constant 0 : i32
    %c0_i32_0 = arith.constant 0 : i32
    %c0_i32_1 = arith.constant 0 : i32
    return %c0_i32, %c0_i32_0 : i32, i32
  }
  func.func @transform_2(%arg0: i32) -> (i32, i32, i32) {
    %c0_i32 = arith.constant 0 : i32
    %c0_i32_0 = arith.constant 0 : i32
    %c0_i32_1 = arith.constant 0 : i32
    %c0_i32_2 = arith.constant 0 : i32
    return %c0_i32, %c0_i32_0, %c0_i32_1 : i32, i32, i32
  }
  func.func @transform_3(%arg0: i32) -> (i32, i32) {
    %c0_i32 = arith.constant 0 : i32
    %c0_i32_0 = arith.constant 0 : i32
    %c0_i32_1 = arith.constant 0 : i32
    return %c0_i32, %c0_i32_0 : i32, i32
  }
  func.func @transform_4(%arg0: i32) -> (i32, i32, i32) {
    %c0_i32 = arith.constant 0 : i32
    %c0_i32_0 = arith.constant 0 : i32
    %c0_i32_1 = arith.constant 0 : i32
    return %arg0, %c0_i32, %c0_i32_0 : i32, i32, i32
  }
}

</mosaic_0001>

<llo_original>
// kernel: multi_head_attention_wrapper.1
$region0: #{multi_head_attention_wrapper.1}
  #allocation0 [shape = 'u32[]', space=smem, size = 0x4, offset = 0x4, fixed_abs, tag = 'smem constant byte address 0x4 - core index']
  #allocation1 [shape = 'u32[144,128]{1,0:T(1,128)}', space=vmem, size = 0x12000, scoped, tag = 'internal scratch']
  %s0 = inlined_call_operand.vmem [shape: bf16[2,8,32], index: 0, kind: input, shape index: {}]
  %s1 = inlined_call_operand.vmem [shape: bf16[32,96], index: 1, kind: input, shape index: {}]
  %s2 = inlined_call_operand.vmem [shape: bf16[2,16,32], index: 2, kind: input, shape index: {}]
  %s3 = inlined_call_operand.vmem [shape: f32[1,32], index: 3, kind: input, shape index: {}]
  %s4 = inlined_call_operand.hbm [shape: f32[2,8,32], index: 4, kind: output, shape index: {}]
  %s5 = sld [smem:[#allocation0]]
  $region49: #{multi_head_attention_wrapper.1} parent=0
    _
  %s7 = ssub.s32 1, %s5
  %s8 = scalar_select 0, %s7, %s5
  $region1: #{multi_head_attention_wrapper.1} parent=0
    #allocation2 [shape = 'u8[8192]{0}', space=vmem, size = 0x2000, scoped, tag = 'output window, operand 0']
    #allocation3 [shape = 's32[2]{0}', space=sflag, size = 0x8, scoped, tag = 'scoped memory for multi_head_attention_wrapper.1']
    %9 = vsyncpa [#allocation3], 0
    %s10 = scalar_lea.sflag [#allocation3], 1
    %11 = vsyncpa %s10, 0
    loop: start=0, step=1, limit=4
    $region2: #{multi_head_attention_wrapper.1} parent=1 // loop_pre_header
      _
    $region3: #{multi_head_attention_wrapper.1} parent=1 // loop_header
      %s13 = sphi 0, %s17
      %p14 = scmp.ge.s32.totalorder %s13, 4
      %s23 = sphi 0, %s25
      %s26 = sphi 0, %s23
      %s27 = sphi 0, %s26
      %s43 = sphi 0, %s27
      %s47 = sphi 0, %s47
      %s49 = sphi 0, %s47
      %s50 = sphi 0, %s49
      %s64 = sphi 0, %s50
      %s68 = sphi 0, %s68
      %s70 = sphi 0, %s68
      %s71 = sphi 0, %s70
      %s85 = sphi 0, %s71
      %s89 = sphi 0, %s89
      %s91 = sphi 0, %s89
      %s92 = sphi 0, %s91
      %s106 = sphi 0, %s92
      %s112 = sphi 0, %s114
      %s115 = sphi 0, %s112
      %s116 = sphi 0, %s115
      %s132 = sphi 0, %s116
    $region4: #{multi_head_attention_wrapper.1} parent=1 // loop_header_branch
      %16 = sbr.rel (%p14) target = $region8
    $region5: #{multi_head_attention_wrapper.1} parent=1 // loop_body
      %s18 = ssub.s32 %s13, 1
      %s19 = ssub.s32 %s13, 2
      %s20 = sadd.s32 %s13, 1
      %s21 = ssub.s32 %s13, %s20
      %p22 = scmp.eq.s32.totalorder %s21, 0
      %s24 = sadd.s32 %s23, 1
      %s25 = scalar_select %p22, %s23, %s24
      %p28 = pneg %p22
      %p29 = scmp.eq.s32.totalorder %s13, 1
      %p30 = por %p28, %p29
      %p31 = scmp.ne.s32.totalorder %s23, %s26
      %p32 = scmp.eq.s32.totalorder %s13, 0
      %p33 = por %p31, %p32
      %p34 = scmp.ne.s32.totalorder %s23, %s26
      %p35 = scmp.eq.s32.totalorder %s18, 1
      %p36 = por %p34, %p35
      %p37 = scmp.ne.s32.totalorder %s26, %s27
      %p38 = scmp.eq.s32.totalorder %s18, 0
      %p39 = por %p37, %p38
      %p40 = scmp.ne.s32.totalorder %s26, %s27
      %p41 = scmp.eq.s32.totalorder %s19, 1
      %p42 = por %p40, %p41
      %p44 = scmp.ne.s32.totalorder %s27, %s43
      %p45 = scmp.eq.s32.totalorder %s19, 0
      %p46 = por %p44, %p45
      %s48 = sadd.s32 %s47, 1
      %p51 = scmp.eq.s32.totalorder %s13, 1
      %p52 = scmp.ne.s32.totalorder %s47, %s49
      %p53 = scmp.eq.s32.totalorder %s13, 0
      %p54 = por %p52, %p53
      %p55 = scmp.ne.s32.totalorder %s47, %s49
      %p56 = scmp.eq.s32.totalorder %s18, 1
      %p57 = por %p55, %p56
      %p58 = scmp.ne.s32.totalorder %s49, %s50
      %p59 = scmp.eq.s32.totalorder %s18, 0
      %p60 = por %p58, %p59
      %p61 = scmp.ne.s32.totalorder %s49, %s50
      %p62 = scmp.eq.s32.totalorder %s19, 1
      %p63 = por %p61, %p62
      %p65 = scmp.ne.s32.totalorder %s50, %s64
      %p66 = scmp.eq.s32.totalorder %s19, 0
      %p67 = por %p65, %p66
      %s69 = sadd.s32 %s68, 1
      %p72 = scmp.eq.s32.totalorder %s13, 1
      %p73 = scmp.ne.s32.totalorder %s68, %s70
      %p74 = scmp.eq.s32.totalorder %s13, 0
      %p75 = por %p73, %p74
      %p76 = scmp.ne.s32.totalorder %s68, %s70
      %p77 = scmp.eq.s32.totalorder %s18, 1
      %p78 = por %p76, %p77
      %p79 = scmp.ne.s32.totalorder %s70, %s71
      %p80 = scmp.eq.s32.totalorder %s18, 0
      %p81 = por %p79, %p80
      %p82 = scmp.ne.s32.totalorder %s70, %s71
      %p83 = scmp.eq.s32.totalorder %s19, 1
      %p84 = por %p82, %p83
      %p86 = scmp.ne.s32.totalorder %s71, %s85
      %p87 = scmp.eq.s32.totalorder %s19, 0
      %p88 = por %p86, %p87
      %s90 = sadd.s32 %s89, 1
      %p93 = scmp.eq.s32.totalorder %s13, 1
      %p94 = scmp.ne.s32.totalorder %s89, %s91
      %p95 = scmp.eq.s32.totalorder %s13, 0
      %p96 = por %p94, %p95
      %p97 = scmp.ne.s32.totalorder %s89, %s91
      %p98 = scmp.eq.s32.totalorder %s18, 1
      %p99 = por %p97, %p98
      %p100 = scmp.ne.s32.totalorder %s91, %s92
      %p101 = scmp.eq.s32.totalorder %s18, 0
      %p102 = por %p100, %p101
      %p103 = scmp.ne.s32.totalorder %s91, %s92
      %p104 = scmp.eq.s32.totalorder %s19, 1
      %p105 = por %p103, %p104
      %p107 = scmp.ne.s32.totalorder %s92, %s106
      %p108 = scmp.eq.s32.totalorder %s19, 0
      %p109 = por %p107, %p108
      %s110 = ssub.s32 %s13, %s20
      %p111 = scmp.eq.s32.totalorder %s110, 0
      %s113 = sadd.s32 %s112, 1
      %s114 = scalar_select %p111, %s112, %s113
      %p117 = pneg %p111
      %p118 = scmp.eq.s32.totalorder %s13, 1
      %p119 = por %p117, %p118
      %p120 = scmp.ne.s32.totalorder %s112, %s115
      %p121 = scmp.eq.s32.totalorder %s13, 0
      %p122 = por %p120, %p121
      %p123 = scmp.ne.s32.totalorder %s112, %s115
      %p124 = scmp.eq.s32.totalorder %s18, 1
      %p125 = por %p123, %p124
      %p126 = scmp.ne.s32.totalorder %s115, %s116
      %p127 = scmp.eq.s32.totalorder %s18, 0
      %p128 = por %p126, %p127
      %p129 = scmp.ne.s32.totalorder %s115, %s116
      %p130 = scmp.eq.s32.totalorder %s19, 1
      %p131 = por %p129, %p130
      %p133 = scmp.ne.s32.totalorder %s116, %s132
      %p134 = scmp.eq.s32.totalorder %s19, 0
      %p135 = por %p133, %p134
      %p136 = scmp.le.s32.totalorder 1, %s13
      %p137 = scmp.lt.s32.totalorder %s13, 3
      %p138 = pnand %p136, %p137
      %p139 = pneg %p138
      // Predicated region
      $region9: #{multi_head_attention_wrapper.1} parent=5 // pred_check
        _
      $region10: #{multi_head_attention_wrapper.1} parent=5 // pred_check_branch
        %141 = sbr.rel (%p138) target = $region12
      $region11: #{multi_head_attention_wrapper.1} parent=5 // pred_region
        %s142 = ssub.s32 %s13, 1
        // Predicated region
        $region13: #{multi_head_attention_wrapper.1} parent=11 // pred_check
          %p143 = pneg %p60
        $region14: #{multi_head_attention_wrapper.1} parent=11 // pred_check_branch
          %145 = sbr.rel (%p143) target = $region16
        $region15: #{multi_head_attention_wrapper.1} parent=11 // pred_region
          _
        $region16: #{multi_head_attention_wrapper.1} parent=11 // pred_fallthru
          _
        // Predicated region
        $region17: #{multi_head_attention_wrapper.1} parent=11 // pred_check
          %p146 = pneg %p81
        $region18: #{multi_head_attention_wrapper.1} parent=11 // pred_check_branch
          %148 = sbr.rel (%p146) target = $region20
        $region19: #{multi_head_attention_wrapper.1} parent=11 // pred_region
          _
        $region20: #{multi_head_attention_wrapper.1} parent=11 // pred_fallthru
          _
        // Predicated region
        $region21: #{multi_head_attention_wrapper.1} parent=11 // pred_check
          %p149 = pneg %p102
        $region22: #{multi_head_attention_wrapper.1} parent=11 // pred_check_branch
          %151 = sbr.rel (%p149) target = $region24
        $region23: #{multi_head_attention_wrapper.1} parent=11 // pred_region
          _
        $region24: #{multi_head_attention_wrapper.1} parent=11 // pred_fallthru
          _
      $region12: #{multi_head_attention_wrapper.1} parent=5 // pred_fallthru
        _
      %p152 = scmp.lt.s32.totalorder %s13, 2
      // Predicated region
      $region25: #{multi_head_attention_wrapper.1} parent=5 // pred_check
        %p153 = pneg %p152
      $region26: #{multi_head_attention_wrapper.1} parent=5 // pred_check_branch
        %155 = sbr.rel (%p153) target = $region28
      $region27: #{multi_head_attention_wrapper.1} parent=5 // pred_region
        // Predicated region
        $region29: #{multi_head_attention_wrapper.1} parent=27 // pred_check
          %p156 = pneg %p33
        $region30: #{multi_head_attention_wrapper.1} parent=27 // pred_check_branch
          %158 = sbr.rel (%p156) target = $region32
        $region31: #{multi_head_attention_wrapper.1} parent=27 // pred_region
          %p159 = scmp.lt.s32.totalorder %s13, 1
          %s160 = scalar_select %p159, %s13, 1
          %s161 = smul.addr %s160, 4
          %s162 = scalar_lea.vmem %s0, %s161
        $region32: #{multi_head_attention_wrapper.1} parent=27 // pred_fallthru
          _
      $region28: #{multi_head_attention_wrapper.1} parent=5 // pred_fallthru
        _
      %p163 = scmp.le.s32.totalorder 1, %s13
      %p164 = scmp.lt.s32.totalorder %s13, 3
      %p165 = pnand %p163, %p164
      %p166 = pneg %p165
      // Predicated region
      $region33: #{multi_head_attention_wrapper.1} parent=5 // pred_check
        _
      $region34: #{multi_head_attention_wrapper.1} parent=5 // pred_check_branch
        %168 = sbr.rel (%p165) target = $region36
      $region35: #{multi_head_attention_wrapper.1} parent=5 // pred_region
        %s169 = ssub.s32 %s13, 1
        %p170 = scmp.lt.s32.totalorder %s18, 1
        %s171 = scalar_select %p170, %s18, 1
        %s172 = smul.addr %s171, 4
        %s173 = scalar_lea.vmem %s0, %s172
        %p174 = pneg %p39
        %p175 = pneg %p36
        %p176 = pneg %p60
        %p177 = pneg %p57
        %p178 = pneg %p81
        %p179 = pneg %p78
        %p180 = pneg %p102
        %p181 = pneg %p99
        %p182 = pneg %p128
        %p183 = pneg %p125
        %s184 = sand.u32 %s115, 1
        %s185 = scalar_lea.sflag [#allocation3], %s184
        %s186 = sand.u32 %s115, 1
        %s187 = smul.addr %s186, 8
        %s188 = scalar_lea.vmem [#allocation2], %s187
        %p189 = scmp.lt.s32.totalorder %s18, 1
        %s190 = scalar_select %p189, %s18, 1
        %s191 = smul.addr %s190, 4
        %s192 = scalar_lea.vmem %s0, %s191
        %v194 = vld [vmem:[%s192] sm:$0xf]
        %v195 = vld [vmem:[%s1] sm:$0xf]
        %v196 = vld [vmem:[%s1 + $0x4] sm:$0xf]
        %v197 = vld [vmem:[%s1 + $0x8] sm:$0xf]
        %v198 = vld [vmem:[%s1 + $0xc] sm:$0xf]
        %v203 = vunpack.c.l.b16 %v195
        %v204 = vunpack.c.l.b16 %v196
        %v205 = vunpack.c.l.b16 %v197
        %v206 = vunpack.c.l.b16 %v198
        %v207 = vpack.c.b16 %v204, %v203
        %v208 = vpack.c.b16 %v206, %v205
        %vm211 = vcmask 261120
        %v213 = vsel %vm211, %v194, 0
        %215 = vmatprep.subr.bf16.mxu0 0
        %216 = vmatpush1.bf16.msra.mxu0 0
        %217 = vmatprep.subr.bf16.mxu0 0
        %218 = vmatpush1.bf16.msra.mxu0 0
        %219 = vmatprep.subr.bf16.mxu0 0
        %220 = vmatpush1.bf16.msra.mxu0 0
        %221 = vmatprep.subr.bf16.mxu0 0
        %222 = vmatpush1.bf16.msra.mxu0 0
        %223 = vmatprep.subr.bf16.mxu0 0
        %224 = vmatpush1.bf16.msra.mxu0 0
        %225 = vmatprep.subr.bf16.mxu0 0
        %226 = vmatpush1.bf16.msra.mxu0 0
        %227 = vmatprep.subr.bf16.mxu0 0
        %228 = vmatpush1.bf16.msra.mxu0 %v208
        %229 = vmatprep.subr.bf16.mxu0 0
        %230 = vmatpush1.bf16.msra.mxu0 %v207
        %231 = vmatprep.subr.bf16.mxu0 0
        %232 = vmatpush2.bf16.msra.mxu0 0
        %233 = vmatprep.subr.bf16.mxu0 0
        %234 = vmatpush2.bf16.msra.mxu0 0
        %235 = vmatprep.subr.bf16.mxu0 0
        %236 = vmatpush2.bf16.msra.mxu0 0
        %237 = vmatprep.subr.bf16.mxu0 0
        %238 = vmatpush2.bf16.msra.mxu0 0
        %239 = vmatprep.subr.bf16.mxu0 0
        %240 = vmatpush2.bf16.msra.mxu0 0
        %241 = vmatprep.subr.bf16.mxu0 0
        %242 = vmatpush2.bf16.msra.mxu0 0
        %243 = vmatprep.subr.bf16.mxu0 0
        %244 = vmatpush2.bf16.msra.mxu0 0
        %245 = vmatprep.subr.bf16.mxu0 0
        %246 = vmatpush2.bf16.msra.mxu0 0
        %247 = vmatprep.mubr.bf16.mxu0 0
        %248 = vmatmul.mubr.bf16.gmra.mxu0 %v213
        %v249 = vpop.f32.mrf.mxu0
        %v250 = vadd.f32 0.0, %v249
        %v251 = vpop.f32.mrf.mxu0
        %v252 = vpop.f32.mrf.mxu0
        %v253 = vpop.f32.mrf.mxu0
        %254 = vdwg.mxu0
        %v255 = vmul.f32 %v250, 0.25
        %v256 = vpack.c.bf16 %v255, %v255
        %v257 = vpack.c.bf16 %v250, %v250
        %v258 = vlaneseq
        %v259 = vshrl.u32 %v258, 7
        %v260 = vlaneseq
        %v261 = vand.u32 %v260, 127
        %vm262 = vcmp.le.s32.totalorder %v261, %v259
        %264 = vrot.lane.b32.xlu0 %v257, 96
        %v265 = vpop.permute.xlu0 %264
        %vm266 = vcmask 130048
        %v268 = vsel %vm266, %v256, 0
        %v271 = vsel %vm266, %v265, 0
        %273 = vmatprep.subr.bf16.mxu0 0
        %274 = vmatpush1.bf16.xpose.msra.mxu0 0
        %275 = vmatprep.subr.bf16.mxu0 0
        %276 = vmatpush1.bf16.xpose.msra.mxu0 0
        %277 = vmatprep.subr.bf16.mxu0 0
        %278 = vmatpush1.bf16.xpose.msra.mxu0 0
        %279 = vmatprep.subr.bf16.mxu0 0
        %280 = vmatpush1.bf16.xpose.msra.mxu0 0
        %281 = vmatprep.subr.bf16.mxu0 0
        %282 = vmatpush1.bf16.xpose.msra.mxu0 0
        %283 = vmatprep.subr.bf16.mxu0 0
        %284 = vmatpush1.bf16.xpose.msra.mxu0 0
        %285 = vmatprep.subr.bf16.mxu0 0
        %286 = vmatpush1.bf16.xpose.msra.mxu0 0
        %287 = vmatprep.subr.bf16.mxu0 0
        %288 = vmatpush1.bf16.xpose.msra.mxu0 %v271
        %289 = vmatprep.subr.bf16.mxu0 0
        %290 = vmatpush2.bf16.xpose.msra.mxu0 0
        %291 = vmatprep.subr.bf16.mxu0 0
        %292 = vmatpush2.bf16.xpose.msra.mxu0 0
        %293 = vmatprep.subr.bf16.mxu0 0
        %294 = vmatpush2.bf16.xpose.msra.mxu0 0
        %295 = vmatprep.subr.bf16.mxu0 0
        %296 = vmatpush2.bf16.xpose.msra.mxu0 0
        %297 = vmatprep.subr.bf16.mxu0 0
        %298 = vmatpush2.bf16.xpose.msra.mxu0 0
        %299 = vmatprep.subr.bf16.mxu0 0
        %300 = vmatpush2.bf16.xpose.msra.mxu0 0
        %301 = vmatprep.subr.bf16.mxu0 0
        %302 = vmatpush2.bf16.xpose.msra.mxu0 0
        %303 = vmatprep.subr.bf16.mxu0 0
        %304 = vmatpush2.bf16.xpose.msra.mxu0 0
        %305 = vmatprep.mubr.bf16.mxu0 0
        %306 = vmatmul.mubr.bf16.gmra.mxu0 %v268
        %v307 = vpop.f32.mrf.mxu0
        %v308 = vadd.f32 0.0, %v307
        %v309 = vpop.f32.mrf.mxu0
        %v310 = vpop.f32.mrf.mxu0
        %v311 = vpop.f32.mrf.mxu0
        %312 = vdwg.mxu0
        %v313 = vsel %vm262, %v308, -inf
        %vm314 = vcmask 64512
        %v315 = vsel %vm314, %v313, -inf
        %316 = vmax.xlane.f32.xlu0 %v315
        %v317 = vpop.xlane.xlu0 %316
        %v318 = vsub.f32 %v313, %v317
        %v319 = vmul.f32 %v318, 1.442695
        %v320 = vpow.pop %v319
        %v321 = vsel %vm314, %v320, 0.0
        %322 = vadd.xlane.f32.xlu0 %v321
        %v323 = vpop.xlane.xlu0 %322
        %v324 = vrcp.pop %v323
        %v325 = vmul.f32 %v320, %v324
        %v326 = vpack.c.bf16 %v325, %v325
        %327 = vrot.lane.b32.xlu0 %v257, 64
        %v328 = vpop.permute.xlu0 %327
        %v330 = vsel %vm314, %v326, 0
        %vm332 = vcmask 1043456
        %v334 = vsel %vm332, %v328, 0
        %336 = vmatprep.subr.bf16.mxu0 0
        %337 = vmatpush1.bf16.msra.mxu0 0
        %338 = vmatprep.subr.bf16.mxu0 0
        %339 = vmatpush1.bf16.msra.mxu0 0
        %340 = vmatprep.subr.bf16.mxu0 0
        %341 = vmatpush1.bf16.msra.mxu0 0
        %342 = vmatprep.subr.bf16.mxu0 0
        %343 = vmatpush1.bf16.msra.mxu0 0
        %344 = vmatprep.subr.bf16.mxu0 0
        %345 = vmatpush1.bf16.msra.mxu0 0
        %346 = vmatprep.subr.bf16.mxu0 0
        %347 = vmatpush1.bf16.msra.mxu0 0
        %348 = vmatprep.subr.bf16.mxu0 0
        %349 = vmatpush1.bf16.msra.mxu0 0
        %350 = vmatprep.subr.bf16.mxu0 0
        %351 = vmatpush1.bf16.msra.mxu0 %v334
        %352 = vmatprep.subr.bf16.mxu0 0
        %353 = vmatpush2.bf16.msra.mxu0 0
        %354 = vmatprep.subr.bf16.mxu0 0
        %355 = vmatpush2.bf16.msra.mxu0 0
        %356 = vmatprep.subr.bf16.mxu0 0
        %357 = vmatpush2.bf16.msra.mxu0 0
        %358 = vmatprep.subr.bf16.mxu0 0
        %359 = vmatpush2.bf16.msra.mxu0 0
        %360 = vmatprep.subr.bf16.mxu0 0
        %361 = vmatpush2.bf16.msra.mxu0 0
        %362 = vmatprep.subr.bf16.mxu0 0
        %363 = vmatpush2.bf16.msra.mxu0 0
        %364 = vmatprep.subr.bf16.mxu0 0
        %365 = vmatpush2.bf16.msra.mxu0 0
        %366 = vmatprep.subr.bf16.mxu0 0
        %367 = vmatpush2.bf16.msra.mxu0 0
        %368 = vmatprep.mubr.bf16.mxu0 0
        %369 = vmatmul.mubr.bf16.gmra.mxu0 %v330
        %v370 = vpop.f32.mrf.mxu0
        %v371 = vadd.f32 0.0, %v370
        %v372 = vpop.f32.mrf.mxu0
        %v373 = vpop.f32.mrf.mxu0
        %v374 = vpop.f32.mrf.mxu0
        %375 = vdwg.mxu0
        %v376 = vpack.c.bf16 %v371, %v371
        %v377 = vld [vmem:[%s2] sm:$0xf]
        %v378 = vld [vmem:[%s2 + $0x4] sm:$0xf]
        %380 = vrot.lane.b32.xlu0 %v256, 112
        %v381 = vpop.permute.xlu0 %380
        %382 = vrot.lane.b32.xlu0 %v257, 80
        %v383 = vpop.permute.xlu0 %382
        %v385 = vsel %vm266, %v381, 0
        %v388 = vsel %vm266, %v383, 0
        %390 = vmatprep.subr.bf16.mxu0 0
        %391 = vmatpush1.bf16.xpose.msra.mxu0 0
        %392 = vmatprep.subr.bf16.mxu0 0
        %393 = vmatpush1.bf16.xpose.msra.mxu0 0
        %394 = vmatprep.subr.bf16.mxu0 0
        %395 = vmatpush1.bf16.xpose.msra.mxu0 0
        %396 = vmatprep.subr.bf16.mxu0 0
        %397 = vmatpush1.bf16.xpose.msra.mxu0 0
        %398 = vmatprep.subr.bf16.mxu0 0
        %399 = vmatpush1.bf16.xpose.msra.mxu0 0
        %400 = vmatprep.subr.bf16.mxu0 0
        %401 = vmatpush1.bf16.xpose.msra.mxu0 0
        %402 = vmatprep.subr.bf16.mxu0 0
        %403 = vmatpush1.bf16.xpose.msra.mxu0 0
        %404 = vmatprep.subr.bf16.mxu0 0
        %405 = vmatpush1.bf16.xpose.msra.mxu0 %v388
        %406 = vmatprep.subr.bf16.mxu0 0
        %407 = vmatpush2.bf16.xpose.msra.mxu0 0
        %408 = vmatprep.subr.bf16.mxu0 0
        %409 = vmatpush2.bf16.xpose.msra.mxu0 0
        %410 = vmatprep.subr.bf16.mxu0 0
        %411 = vmatpush2.bf16.xpose.msra.mxu0 0
        %412 = vmatprep.subr.bf16.mxu0 0
        %413 = vmatpush2.bf16.xpose.msra.mxu0 0
        %414 = vmatprep.subr.bf16.mxu0 0
        %415 = vmatpush2.bf16.xpose.msra.mxu0 0
        %416 = vmatprep.subr.bf16.mxu0 0
        %417 = vmatpush2.bf16.xpose.msra.mxu0 0
        %418 = vmatprep.subr.bf16.mxu0 0
        %419 = vmatpush2.bf16.xpose.msra.mxu0 0
        %420 = vmatprep.subr.bf16.mxu0 0
        %421 = vmatpush2.bf16.xpose.msra.mxu0 0
        %422 = vmatprep.mubr.bf16.mxu0 0
        %423 = vmatmul.mubr.bf16.gmra.mxu0 %v385
        %v424 = vpop.f32.mrf.mxu0
        %v425 = vadd.f32 0.0, %v424
        %v426 = vpop.f32.mrf.mxu0
        %v427 = vpop.f32.mrf.mxu0
        %v428 = vpop.f32.mrf.mxu0
        %429 = vdwg.mxu0
        %v430 = vsel %vm262, %v425, -inf
        %v431 = vsel %vm314, %v430, -inf
        %432 = vmax.xlane.f32.xlu0 %v431
        %v433 = vpop.xlane.xlu0 %432
        %v434 = vsub.f32 %v430, %v433
        %v435 = vmul.f32 %v434, 1.442695
        %v436 = vpow.pop %v435
        %v437 = vsel %vm314, %v436, 0.0
        %438 = vadd.xlane.f32.xlu0 %v437
        %v439 = vpop.xlane.xlu0 %438
        %v440 = vrcp.pop %v439
        %v441 = vmul.f32 %v436, %v440
        %v442 = vpack.c.bf16 %v441, %v441
        %443 = vrot.lane.b32.xlu0 %v257, 48
        %v444 = vpop.permute.xlu0 %443
        %v446 = vsel %vm314, %v442, 0
        %v449 = vsel %vm332, %v444, 0
        %451 = vmatprep.subr.bf16.mxu0 0
        %452 = vmatpush1.bf16.msra.mxu0 0
        %453 = vmatprep.subr.bf16.mxu0 0
        %454 = vmatpush1.bf16.msra.mxu0 0
        %455 = vmatprep.subr.bf16.mxu0 0
        %456 = vmatpush1.bf16.msra.mxu0 0
        %457 = vmatprep.subr.bf16.mxu0 0
        %458 = vmatpush1.bf16.msra.mxu0 0
        %459 = vmatprep.subr.bf16.mxu0 0
        %460 = vmatpush1.bf16.msra.mxu0 0
        %461 = vmatprep.subr.bf16.mxu0 0
        %462 = vmatpush1.bf16.msra.mxu0 0
        %463 = vmatprep.subr.bf16.mxu0 0
        %464 = vmatpush1.bf16.msra.mxu0 0
        %465 = vmatprep.subr.bf16.mxu0 0
        %466 = vmatpush1.bf16.msra.mxu0 %v449
        %467 = vmatprep.subr.bf16.mxu0 0
        %468 = vmatpush2.bf16.msra.mxu0 0
        %469 = vmatprep.subr.bf16.mxu0 0
        %470 = vmatpush2.bf16.msra.mxu0 0
        %471 = vmatprep.subr.bf16.mxu0 0
        %472 = vmatpush2.bf16.msra.mxu0 0
        %473 = vmatprep.subr.bf16.mxu0 0
        %474 = vmatpush2.bf16.msra.mxu0 0
        %475 = vmatprep.subr.bf16.mxu0 0
        %476 = vmatpush2.bf16.msra.mxu0 0
        %477 = vmatprep.subr.bf16.mxu0 0
        %478 = vmatpush2.bf16.msra.mxu0 0
        %479 = vmatprep.subr.bf16.mxu0 0
        %480 = vmatpush2.bf16.msra.mxu0 0
        %481 = vmatprep.subr.bf16.mxu0 0
        %482 = vmatpush2.bf16.msra.mxu0 0
        %483 = vmatprep.mubr.bf16.mxu0 0
        %484 = vmatmul.mubr.bf16.gmra.mxu0 %v446
        %v485 = vpop.f32.mrf.mxu0
        %v486 = vadd.f32 0.0, %v485
        %v487 = vpop.f32.mrf.mxu0
        %v488 = vpop.f32.mrf.mxu0
        %v489 = vpop.f32.mrf.mxu0
        %490 = vdwg.mxu0
        %v491 = vpack.c.bf16 %v486, %v486
        %s492 = scalar_lea.vmem %s2, 8
        %v493 = vld [vmem:[%s492] sm:$0xf]
        %v494 = vld [vmem:[%s492 + $0x4] sm:$0xf]
        %v497 = vunpack.c.l.b16 %v493
        %v498 = vunpack.c.l.b16 %v494
        %v499 = vpack.c.b16 %v498, %v497
        %v502 = vsel %vm266, %v491, 0
        %504 = vmatprep.subr.bf16.mxu0 0
        %505 = vmatpush1.bf16.msra.mxu0 0
        %506 = vmatprep.subr.bf16.mxu0 0
        %507 = vmatpush1.bf16.msra.mxu0 0
        %508 = vmatprep.subr.bf16.mxu0 0
        %509 = vmatpush1.bf16.msra.mxu0 0
        %510 = vmatprep.subr.bf16.mxu0 0
        %511 = vmatpush1.bf16.msra.mxu0 0
        %512 = vmatprep.subr.bf16.mxu0 0
        %513 = vmatpush1.bf16.msra.mxu0 0
        %514 = vmatprep.subr.bf16.mxu0 0
        %515 = vmatpush1.bf16.msra.mxu0 0
        %516 = vmatprep.subr.bf16.mxu0 0
        %517 = vmatpush1.bf16.msra.mxu0 0
        %518 = vmatprep.subr.bf16.mxu0 0
        %519 = vmatpush1.bf16.msra.mxu0 %v499
        %520 = vmatprep.subr.bf16.mxu0 0
        %521 = vmatpush2.bf16.msra.mxu0 0
        %522 = vmatprep.subr.bf16.mxu0 0
        %523 = vmatpush2.bf16.msra.mxu0 0
        %524 = vmatprep.subr.bf16.mxu0 0
        %525 = vmatpush2.bf16.msra.mxu0 0
        %526 = vmatprep.subr.bf16.mxu0 0
        %527 = vmatpush2.bf16.msra.mxu0 0
        %528 = vmatprep.subr.bf16.mxu0 0
        %529 = vmatpush2.bf16.msra.mxu0 0
        %530 = vmatprep.subr.bf16.mxu0 0
        %531 = vmatpush2.bf16.msra.mxu0 0
        %532 = vmatprep.subr.bf16.mxu0 0
        %533 = vmatpush2.bf16.msra.mxu0 0
        %534 = vmatprep.subr.bf16.mxu0 0
        %535 = vmatpush2.bf16.msra.mxu0 0
        %536 = vmatprep.mubr.bf16.mxu0 0
        %537 = vmatmul.mubr.bf16.gmra.mxu0 %v502
        %v538 = vpop.f32.mrf.mxu0
        %v539 = vadd.f32 0.0, %v538
        %v540 = vpop.f32.mrf.mxu0
        %v541 = vpop.f32.mrf.mxu0
        %v542 = vpop.f32.mrf.mxu0
        %543 = vdwg.mxu0
        %v546 = vunpack.c.l.b16 %v377
        %v547 = vunpack.c.l.b16 %v378
        %v548 = vpack.c.b16 %v547, %v546
        %v551 = vsel %vm266, %v376, 0
        %553 = vmatprep.subr.bf16.mxu0 0
        %554 = vmatpush1.bf16.msra.mxu0 0
        %555 = vmatprep.subr.bf16.mxu0 0
        %556 = vmatpush1.bf16.msra.mxu0 0
        %557 = vmatprep.subr.bf16.mxu0 0
        %558 = vmatpush1.bf16.msra.mxu0 0
        %559 = vmatprep.subr.bf16.mxu0 0
        %560 = vmatpush1.bf16.msra.mxu0 0
        %561 = vmatprep.subr.bf16.mxu0 0
        %562 = vmatpush1.bf16.msra.mxu0 0
        %563 = vmatprep.subr.bf16.mxu0 0
        %564 = vmatpush1.bf16.msra.mxu0 0
        %565 = vmatprep.subr.bf16.mxu0 0
        %566 = vmatpush1.bf16.msra.mxu0 0
        %567 = vmatprep.subr.bf16.mxu0 0
        %568 = vmatpush1.bf16.msra.mxu0 %v548
        %569 = vmatprep.subr.bf16.mxu0 0
        %570 = vmatpush2.bf16.msra.mxu0 0
        %571 = vmatprep.subr.bf16.mxu0 0
        %572 = vmatpush2.bf16.msra.mxu0 0
        %573 = vmatprep.subr.bf16.mxu0 0
        %574 = vmatpush2.bf16.msra.mxu0 0
        %575 = vmatprep.subr.bf16.mxu0 0
        %576 = vmatpush2.bf16.msra.mxu0 0
        %577 = vmatprep.subr.bf16.mxu0 0
        %578 = vmatpush2.bf16.msra.mxu0 0
        %579 = vmatprep.subr.bf16.mxu0 0
        %580 = vmatpush2.bf16.msra.mxu0 0
        %581 = vmatprep.subr.bf16.mxu0 0
        %582 = vmatpush2.bf16.msra.mxu0 0
        %583 = vmatprep.subr.bf16.mxu0 0
        %584 = vmatpush2.bf16.msra.mxu0 0
        %585 = vmatprep.mubr.bf16.mxu0 0
        %586 = vmatmul.mubr.bf16.gmra.mxu0 %v551
        %v587 = vpop.f32.mrf.mxu0
        %v588 = vadd.f32 %v539, %v587
        %v589 = vpop.f32.mrf.mxu0
        %v590 = vpop.f32.mrf.mxu0
        %v591 = vpop.f32.mrf.mxu0
        %592 = vdwg.mxu0
        %v593 = vld [vmem:[%s3] sm:$0x1]
        %v595 = vlaneseq
        %v596 = vshrl.u32 %v595, 7
        %v597 = vsub.s32 0, %v596
        %v598 = vrot.slane %v593, %v597
        %v600 = vadd.f32 %v588, %v598
        %601 = vst.msk [vmem:[%s188] sm:$0xff] %vm211, %v600
        %s602 = sand.u32 %s115, 1
        %s603 = scalar_lea.sflag [#allocation3], %s602
        %s604 = sand.u32 %s115, 1
        %s605 = smul.addr %s604, 8
        %s606 = scalar_lea.vmem [#allocation2], %s605
        // Predicated region
        $region37: #{multi_head_attention_wrapper.1} parent=35 // pred_check
          %p607 = pneg %p125
        $region38: #{multi_head_attention_wrapper.1} parent=35 // pred_check_branch
          %609 = sbr.rel (%p607) target = $region40
        $region39: #{multi_head_attention_wrapper.1} parent=35 // pred_region
          %s611 = ssub.s32 128, 128
          %612 = vsyncadd %s603, %s611
          %s613 = smul.addr %s18, 128
          %s614 = scalar_lea.hbm %s4, %s613
          %s616 = sshll.u32 %s606, 4
          %s617 = int_to_ptr.vmem [resolvable:$true] %s616
          %619 = dma.vmem_to_hbm [thread:$0]  %s617, 128, %s614, %s603
        $region40: #{multi_head_attention_wrapper.1} parent=35 // pred_fallthru
          _
      $region36: #{multi_head_attention_wrapper.1} parent=5 // pred_fallthru
        _
      %p620 = scmp.le.s32.totalorder 2, %s13
      // Predicated region
      $region41: #{multi_head_attention_wrapper.1} parent=5 // pred_check
        %p621 = pneg %p620
      $region42: #{multi_head_attention_wrapper.1} parent=5 // pred_check_branch
        %623 = sbr.rel (%p621) target = $region44
      $region43: #{multi_head_attention_wrapper.1} parent=5 // pred_region
        %s624 = ssub.s32 %s13, 2
        // Predicated region
        $region45: #{multi_head_attention_wrapper.1} parent=43 // pred_check
          %p625 = pneg %p131
        $region46: #{multi_head_attention_wrapper.1} parent=43 // pred_check_branch
          %627 = sbr.rel (%p625) target = $region48
        $region47: #{multi_head_attention_wrapper.1} parent=43 // pred_region
          %s628 = sand.u32 %s116, 1
          %s629 = scalar_lea.sflag [#allocation3], %s628
          %s630 = sand.u32 %s116, 1
          %s631 = smul.addr %s630, 8
          %s632 = scalar_lea.vmem [#allocation2], %s631
          %633 = dma.done %s629, 128
        $region48: #{multi_head_attention_wrapper.1} parent=43 // pred_fallthru
          _
      $region44: #{multi_head_attention_wrapper.1} parent=5 // pred_fallthru
        _
    $region6: #{multi_head_attention_wrapper.1} parent=1 // loop_footer
      %s17 = sadd.s32 1, %s13
    $region7: #{multi_head_attention_wrapper.1} parent=1 // loop_footer_branch
      %12 = sbr.rel target = $region3
    $region8: #{multi_head_attention_wrapper.1} parent=1 // loop_exit
      _
    %634 = vsyncpa [#allocation3], 1
    %s635 = scalar_lea.sflag [#allocation3], 1
    %636 = vsyncpa %s635, 1

</llo_original>
